<compile_context>
chip_gen: v6e
topology: v6e:2x2x1
jax: 0.10.0
libtpu: 0.0.40
codegen_flags: <defaults>
</compile_context>

<pallas_src>
import functools

import jax
import jax.numpy as jnp
import numpy as np
from jax.experimental import pallas as pl
from jax.experimental.pallas import tpu as pltpu


def ehr_embed_kernel(x_ref, w_ref, pe_ref, o_ref, *, seqs_per_tile, seq_len):
    # x_ref : (spt*S, F)    bf16  -- spt flattened input sequences (row tile)
    # w_ref : (F, E)        bf16  -- weight, pre-transposed, grid-invariant
    # pe_ref: (S+1, E)      f32   -- fused table: row 0 = pe[0], rows 1..S = pe[1:] + bias
    # o_ref : (spt, S+1, E) f32   -- output tile in the final layout (CLS row included)
    y = jnp.dot(x_ref[...], w_ref[...],
                preferred_element_type=jnp.float32)          # (spt*S, E), f32 accumulate
    pe_cls = pe_ref[0:1, :]                                   # (1, E)  CLS row = pe[0]
    pe_body = pe_ref[1:, :]                                   # (S, E)  pe[1:] + bias
    # Direct region writes (no zeros/concatenate): row 0 = pe[0], rows 1..S = y + pe.
    for j in range(seqs_per_tile):                            # static, bounded unroll (<= 64)
        o_ref[j, 0:1, :] = pe_cls
        o_ref[j, 1:, :] = (y[j * seq_len:(j + 1) * seq_len, :] + pe_body).astype(o_ref.dtype)
    # TODO(synk): nn.Dropout(p=0.1) in training mode is stochastic; eval-mode
    # (identity) semantics are implemented here.


def make_positional_encoding(d_model, max_len):
    # Mirrors PositionalEncoding.__init__ (plain JAX/NumPy glue).
    position = np.arange(0, max_len, dtype=np.float32)[:, None]
    div_term = np.exp(np.arange(0, d_model, 2, dtype=np.float32)
                      * -(np.log(10000.0) / d_model))
    pe = np.zeros((max_len, d_model), dtype=np.float32)
    pe[:, 0::2] = np.sin(position * div_term)
    pe[:, 1::2] = np.cos(position * div_term)
    return jnp.asarray(pe)                                    # (max_len, d_model)


def prepare_params(weight, bias, pe_table, *, compute_dtype=jnp.bfloat16):
    """Hoisted parameter prep (call once): transpose weight, fold bias into PE rows 1..S."""
    w_t = weight.T.astype(compute_dtype)                                        # (F, E)
    pe_fused = pe_table.astype(jnp.float32).at[1:].add(bias.astype(jnp.float32))  # (S+1, E)
    return w_t, pe_fused


def _seqs_per_tile(batch, seq_len, target_rows, max_unroll=64):
    """Pick sequences per grid step (~target_rows flattened rows, bounded unroll)."""
    spt = max(1, min(batch, max(1, target_rows // max(seq_len, 1)), max_unroll))
    if spt >= batch:
        return batch                       # single step; block equals full (padded) array
    # Multi-step grid: keep the row tile sublane-aligned (bf16 sublane tile = 16 rows).
    while spt > 1 and (spt * seq_len) % 16 != 0:
        spt -= 1
    if (spt * seq_len) % 16 != 0:
        return batch                       # fall back to a single full-array tile
    return spt


@functools.partial(jax.jit, static_argnames=("target_rows", "compute_dtype"))
def ehr_embedding(x, w_t, pe_fused, *, target_rows=512, compute_dtype=jnp.bfloat16):
    """x: (B, S, F) f32; w_t: (F, E) pre-transposed; pe_fused: (S+1, E) with bias folded.
    Returns (B, S+1, E) f32."""
    B, S, F = x.shape
    E = w_t.shape[1]
    assert pe_fused.shape == (S + 1, E)

    spt = _seqs_per_tile(B, S, target_rows)
    n_tiles = pl.cdiv(B, spt)
    B_pad = n_tiles * spt

    x = x.astype(compute_dtype)
    if B_pad != B:
        x = jnp.pad(x, ((0, B_pad - B), (0, 0), (0, 0)))
    x_flat = x.reshape(B_pad * S, F)       # flattened rows -> one big matmul per tile

    kernel = functools.partial(ehr_embed_kernel, seqs_per_tile=spt, seq_len=S)

    out = pl.pallas_call(
        kernel,
        out_shape=jax.ShapeDtypeStruct((B_pad, S + 1, E), jnp.float32),
        grid_spec=pl.GridSpec(
            grid=(n_tiles,),
            in_specs=[
                pl.BlockSpec((spt * S, F), lambda i: (i, 0)),     # streaming activations
                pl.BlockSpec((F, E), lambda i: (0, 0)),           # weight (grid-invariant)
                pl.BlockSpec((S + 1, E), lambda i: (0, 0)),       # fused PE (grid-invariant)
            ],
            out_specs=pl.BlockSpec((spt, S + 1, E), lambda i: (i, 0, 0)),
        ),
        compiler_params=pltpu.CompilerParams(dimension_semantics=("parallel",)),
    )(x_flat, w_t, pe_fused)

    return out[:B]


if __name__ == "__main__":
    # Small shapes consistent with the module. The original forward only broadcasts
    # correctly when seq_len == max_len (pe[:x.size(1), :] slices a size-1 leading
    # dim), so the PE table is built with max_len = S.
    B, S, F, E = 2, 8, 16, 32
    key = jax.random.PRNGKey(0)
    kx, kw, kb = jax.random.split(key, 3)

    x = jax.random.normal(kx, (B, S, F), dtype=jnp.float32)
    weight = jax.random.normal(kw, (E, F), dtype=jnp.float32) * (1.0 / np.sqrt(F))
    bias = jax.random.normal(kb, (E,), dtype=jnp.float32) * 0.01
    pe_table = make_positional_encoding(E, S + 1)               # (S+1, E)

    w_t, pe_fused = prepare_params(weight, bias, pe_table)      # hoisted, done once

    out = jax.block_until_ready(ehr_embedding(x, w_t, pe_fused))
    assert out.shape == (B, S + 1, E)

    # Pure-JAX reference (inputs rounded to bf16 to match what the kernel feeds the MXU).
    def reference(xv, wv, bv, pev):
        xr = xv.astype(jnp.bfloat16).astype(jnp.float32)
        wr = wv.astype(jnp.bfloat16).astype(jnp.float32)
        y = jnp.einsum("bsf,ef->bse", xr, wr) + bv
        y = jnp.concatenate([jnp.zeros((xv.shape[0], 1, wv.shape[0]), jnp.float32), y], axis=1)
        return y + pev[None, :, :]

    ref = reference(x, weight, bias, pe_table)
    np.testing.assert_allclose(np.asarray(out), np.asarray(ref), rtol=2e-2, atol=2e-2)

    # Second config: forces a multi-step grid (3 steps) with batch padding (5 -> 6).
    B2 = 5
    x2 = jax.random.normal(jax.random.PRNGKey(1), (B2, S, F), dtype=jnp.float32)
    out2 = jax.block_until_ready(ehr_embedding(x2, w_t, pe_fused, target_rows=16))
    ref2 = reference(x2, weight, bias, pe_table)
    np.testing.assert_allclose(np.asarray(out2), np.asarray(ref2), rtol=2e-2, atol=2e-2)

    print("KERNEL_OK")
</pallas_src>

<mosaic_0001>
module attributes {stable_mosaic.version = 11 : i64} {
  func.func @ehr_embed_kernel(%arg0: i32, %arg1: memref<16x16xbf16, #tpu.memory_space<vmem>>, %arg2: memref<16x32xbf16, #tpu.memory_space<vmem>>, %arg3: memref<9x32xf32, #tpu.memory_space<vmem>>, %arg4: memref<2x9x32xf32, #tpu.memory_space<vmem>>) attributes {dimension_semantics = [#tpu.dimension_semantics<parallel>], iteration_bounds = array<i64: 1>, scalar_prefetch = 0 : i64, scratch_operands = 0 : i64, tpu.core_type = #tpu.core_type<tc>, window_params = [{transform_indices = @transform_0, window_bounds = array<i64: 16, 16>}, {pipeline_mode = #tpu.pipeline_mode<synchronous>, transform_indices = @transform_1, window_bounds = array<i64: 16, 32>}, {pipeline_mode = #tpu.pipeline_mode<synchronous>, transform_indices = @transform_2, window_bounds = array<i64: 9, 32>}, {transform_indices = @transform_3, window_bounds = array<i64: 2, 9, 32>}]} {
    %c0 = arith.constant 0 : index
    %c0_0 = arith.constant 0 : index
    %0 = vector.load %arg1[%c0, %c0_0] : memref<16x16xbf16, #tpu.memory_space<vmem>>, vector<16x16xbf16>
    %c0_1 = arith.constant 0 : index
    %c0_2 = arith.constant 0 : index
    %1 = vector.load %arg2[%c0_1, %c0_2] : memref<16x32xbf16, #tpu.memory_space<vmem>>, vector<16x32xbf16>
    %cst = arith.constant dense<0.000000e+00> : vector<16x32xf32>
    %2 = tpu.matmul %0, %1, %cst {dimension_numbers = #tpu.dot_dimension_numbers<[1], [0], [0], [1], [0, 0, 1, 1], [], []>} : vector<16x16xbf16>, vector<16x32xbf16>, vector<16x32xf32> -> vector<16x32xf32>
    %c0_3 = arith.constant 0 : index
    %c0_4 = arith.constant 0 : index
    %3 = vector.load %arg3[%c0_3, %c0_4] : memref<9x32xf32, #tpu.memory_space<vmem>>, vector<1x32xf32>
    %c1 = arith.constant 1 : index
    %c0_5 = arith.constant 0 : index
    %4 = vector.load %arg3[%c1, %c0_5] : memref<9x32xf32, #tpu.memory_space<vmem>>, vector<8x32xf32>
    %c0_6 = arith.constant 0 : index
    %c0_7 = arith.constant 0 : index
    %c0_8 = arith.constant 0 : index
    %5 = vector.load %arg4[%c0_6, %c0_7, %c0_8] : memref<2x9x32xf32, #tpu.memory_space<vmem>>, vector<1x1x32xf32>
    %6 = vector.shape_cast %5 : vector<1x1x32xf32> to vector<1x32xf32>
    %7 = vector.shape_cast %3 : vector<1x32xf32> to vector<1x1x32xf32>
    tpu.vector_store %arg4[%c0_6, %c0_7, %c0_8], %7 {strides = array<i32>} : memref<2x9x32xf32, #tpu.memory_space<vmem>>, vector<1x1x32xf32>,
    %8 = vector.extract_strided_slice %2 {offsets = [0, 0], sizes = [8, 32], strides = [1, 1]} : vector<16x32xf32> to vector<8x32xf32>
    %9 = arith.addf %8, %4 : vector<8x32xf32>
    %c0_9 = arith.constant 0 : index
    %c1_10 = arith.constant 1 : index
    %c0_11 = arith.constant 0 : index
    %10 = vector.load %arg4[%c0_9, %c1_10, %c0_11] : memref<2x9x32xf32, #tpu.memory_space<vmem>>, vector<1x8x32xf32>
    %11 = vector.shape_cast %10 : vector<1x8x32xf32> to vector<8x32xf32>
    %12 = vector.shape_cast %9 : vector<8x32xf32> to vector<1x8x32xf32>
    tpu.vector_store %arg4[%c0_9, %c1_10, %c0_11], %12 {strides = array<i32>} : memref<2x9x32xf32, #tpu.memory_space<vmem>>, vector<1x8x32xf32>,
    %c1_12 = arith.constant 1 : index
    %c0_13 = arith.constant 0 : index
    %c0_14 = arith.constant 0 : index
    %13 = vector.load %arg4[%c1_12, %c0_13, %c0_14] : memref<2x9x32xf32, #tpu.memory_space<vmem>>, vector<1x1x32xf32>
    %14 = vector.shape_cast %13 : vector<1x1x32xf32> to vector<1x32xf32>
    %15 = vector.shape_cast %3 : vector<1x32xf32> to vector<1x1x32xf32>
    tpu.vector_store %arg4[%c1_12, %c0_13, %c0_14], %15 {strides = array<i32>} : memref<2x9x32xf32, #tpu.memory_space<vmem>>, vector<1x1x32xf32>,
    %16 = vector.extract_strided_slice %2 {offsets = [8, 0], sizes = [8, 32], strides = [1, 1]} : vector<16x32xf32> to vector<8x32xf32>
    %17 = arith.addf %16, %4 : vector<8x32xf32>
    %c1_15 = arith.constant 1 : index
    %c1_16 = arith.constant 1 : index
    %c0_17 = arith.constant 0 : index
    %18 = vector.load %arg4[%c1_15, %c1_16, %c0_17] : memref<2x9x32xf32, #tpu.memory_space<vmem>>, vector<1x8x32xf32>
    %19 = vector.shape_cast %18 : vector<1x8x32xf32> to vector<8x32xf32>
    %20 = vector.shape_cast %17 : vector<8x32xf32> to vector<1x8x32xf32>
    tpu.vector_store %arg4[%c1_15, %c1_16, %c0_17], %20 {strides = array<i32>} : memref<2x9x32xf32, #tpu.memory_space<vmem>>, vector<1x8x32xf32>,
    return
  }
  func.func @transform_0(%arg0: i32) -> (i32, i32) {
    %c0_i32 = arith.constant 0 : i32
    %c0_i32_0 = arith.constant 0 : i32
    return %arg0, %c0_i32 : i32, i32
  }
  func.func @transform_1(%arg0: i32) -> (i32, i32) {
    %c0_i32 = arith.constant 0 : i32
    %c0_i32_0 = arith.constant 0 : i32
    %c0_i32_1 = arith.constant 0 : i32
    return %c0_i32, %c0_i32_0 : i32, i32
  }
  func.func @transform_2(%arg0: i32) -> (i32, i32) {
    %c0_i32 = arith.constant 0 : i32
    %c0_i32_0 = arith.constant 0 : i32
    %c0_i32_1 = arith.constant 0 : i32
    return %c0_i32, %c0_i32_0 : i32, i32
  }
  func.func @transform_3(%arg0: i32) -> (i32, i32, i32) {
    %c0_i32 = arith.constant 0 : i32
    %c0_i32_0 = arith.constant 0 : i32
    %c0_i32_1 = arith.constant 0 : i32
    return %arg0, %c0_i32, %c0_i32_0 : i32, i32, i32
  }
}

</mosaic_0001>

<llo_original>
// kernel: ehr_embedding.1
$region0: #{ehr_embedding.1}
  #allocation0 [shape = 'u32[]', space=smem, size = 0x4, offset = 0x4, fixed_abs, tag = 'smem constant byte address 0x4 - core index']
  #allocation1 [shape = 'u32[144,128]{1,0:T(1,128)}', space=vmem, size = 0x12000, scoped, tag = 'internal scratch']
  %s0 = inlined_call_operand.vmem [shape: bf16[16,16], index: 0, kind: input, shape index: {}]
  %s1 = inlined_call_operand.vmem [shape: bf16[16,32], index: 1, kind: input, shape index: {}]
  %s2 = inlined_call_operand.vmem [shape: f32[9,32], index: 2, kind: input, shape index: {}]
  %s3 = inlined_call_operand.vmem [shape: f32[2,9,32], index: 3, kind: output, shape index: {}]
  %s4 = sld [smem:[#allocation0]]
  $region22: #{ehr_embedding.1} parent=0
    _
  %s6 = ssub.s32 1, %s4
  %s7 = scalar_select 0, %s6, %s4
  // Predicated region
  $region2: #{ehr_embedding.1} parent=0 // pred_check
    _
  $region3: #{ehr_embedding.1} parent=0 // pred_check_branch
    %9 = sbr.rel (0) target = $region5
  $region4: #{ehr_embedding.1} parent=0 // pred_region
    _
  $region5: #{ehr_embedding.1} parent=0 // pred_fallthru
    _
  // Predicated region
  $region6: #{ehr_embedding.1} parent=0 // pred_check
    _
  $region7: #{ehr_embedding.1} parent=0 // pred_check_branch
    %11 = sbr.rel (0) target = $region9
  $region8: #{ehr_embedding.1} parent=0 // pred_region
    _
  $region9: #{ehr_embedding.1} parent=0 // pred_fallthru
    _
  // Predicated region
  $region10: #{ehr_embedding.1} parent=0 // pred_check
    _
  $region11: #{ehr_embedding.1} parent=0 // pred_check_branch
    %13 = sbr.rel (0) target = $region13
  $region12: #{ehr_embedding.1} parent=0 // pred_region
    _
  $region13: #{ehr_embedding.1} parent=0 // pred_fallthru
    _
  %v15 = vld [vmem:[%s0] sm:$0xf]
  %v16 = vld [vmem:[%s0 + $0x4] sm:$0xf]
  %v17 = vld [vmem:[%s1] sm:$0xf]
  %v18 = vld [vmem:[%s1 + $0x4] sm:$0xf]
  %v21 = vunpack.c.l.b16 %v15
  %v22 = vunpack.c.l.b16 %v16
  %v23 = vpack.c.b16 %v22, %v21
  %v26 = vunpack.c.l.b16 %v17
  %v27 = vunpack.c.l.b16 %v18
  %v28 = vpack.c.b16 %v27, %v26
  %vm30 = vcmask 130048
  %v32 = vsel %vm30, %v23, 0
  %34 = vmatprep.subr.bf16.mxu0 0
  %35 = vmatpush1.bf16.msra.mxu0 0
  %36 = vmatprep.subr.bf16.mxu0 0
  %37 = vmatpush1.bf16.msra.mxu0 0
  %38 = vmatprep.subr.bf16.mxu0 0
  %39 = vmatpush1.bf16.msra.mxu0 0
  %40 = vmatprep.subr.bf16.mxu0 0
  %41 = vmatpush1.bf16.msra.mxu0 0
  %42 = vmatprep.subr.bf16.mxu0 0
  %43 = vmatpush1.bf16.msra.mxu0 0
  %44 = vmatprep.subr.bf16.mxu0 0
  %45 = vmatpush1.bf16.msra.mxu0 0
  %46 = vmatprep.subr.bf16.mxu0 0
  %47 = vmatpush1.bf16.msra.mxu0 0
  %48 = vmatprep.subr.bf16.mxu0 0
  %49 = vmatpush1.bf16.msra.mxu0 %v28
  %50 = vmatprep.subr.bf16.mxu0 0
  %51 = vmatpush2.bf16.msra.mxu0 0
  %52 = vmatprep.subr.bf16.mxu0 0
  %53 = vmatpush2.bf16.msra.mxu0 0
  %54 = vmatprep.subr.bf16.mxu0 0
  %55 = vmatpush2.bf16.msra.mxu0 0
  %56 = vmatprep.subr.bf16.mxu0 0
  %57 = vmatpush2.bf16.msra.mxu0 0
  %58 = vmatprep.subr.bf16.mxu0 0
  %59 = vmatpush2.bf16.msra.mxu0 0
  %60 = vmatprep.subr.bf16.mxu0 0
  %61 = vmatpush2.bf16.msra.mxu0 0
  %62 = vmatprep.subr.bf16.mxu0 0
  %63 = vmatpush2.bf16.msra.mxu0 0
  %64 = vmatprep.subr.bf16.mxu0 0
  %65 = vmatpush2.bf16.msra.mxu0 0
  %66 = vmatprep.mubr.bf16.mxu0 0
  %67 = vmatmul.mubr.bf16.gmra.mxu0 %v32
  %v68 = vpop.f32.mrf.mxu0
  %v69 = vadd.f32 0.0, %v68
  %v70 = vpop.f32.mrf.mxu0
  %v71 = vpop.f32.mrf.mxu0
  %v72 = vadd.f32 0.0, %v71
  %v73 = vpop.f32.mrf.mxu0
  %74 = vdwg.mxu0
  %v75 = vld [vmem:[%s2] sm:$0x1]
  %v76 = vld [vmem:[%s2 + $0x1] sm:$0xff]
  %vm77 = vcmask 253952
  %78 = vst.msk [vmem:[%s3] sm:$0x1] %vm77, %v75
  %v79 = vadd.f32 %v69, %v76
  %vm80 = vcmask 261120
  %81 = vst.msk [vmem:[%s3 + $0x1] sm:$0xff] %vm80, %v79
  %s82 = scalar_lea.vmem %s3, 16
  %83 = vst.msk [vmem:[%s82] sm:$0x1] %vm77, %v75
  %v84 = vadd.f32 %v72, %v76
  %85 = vst.msk [vmem:[%s82 + $0x1] sm:$0xff] %vm80, %v84
  // Predicated region
  $region14: #{ehr_embedding.1} parent=0 // pred_check
    _
  $region15: #{ehr_embedding.1} parent=0 // pred_check_branch
    %87 = sbr.rel (0) target = $region17
  $region16: #{ehr_embedding.1} parent=0 // pred_region
    _
  $region17: #{ehr_embedding.1} parent=0 // pred_fallthru
    _
  // Predicated region
  $region18: #{ehr_embedding.1} parent=0 // pred_check
    _
  $region19: #{ehr_embedding.1} parent=0 // pred_check_branch
    %89 = sbr.rel (0) target = $region21
  $region20: #{ehr_embedding.1} parent=0 // pred_region
    _
  $region21: #{ehr_embedding.1} parent=0 // pred_fallthru
    _

</llo_original>
